<compile_context>
chip_gen: v7x
topology: tpu7x:2x2x1
jax: 0.10.0
libtpu: 0.0.40
codegen_flags: <defaults>
</compile_context>

<pallas_src>
import functools
import math

import jax
import jax.numpy as jnp
from jax.experimental import pallas as pl
from jax.experimental.pallas import tpu as pltpu


def _label_agg_kernel(olens_ref, x_ref, o_ref, *, stride_c, win_c, thresh):
    # olens_ref: (B,) int32 in SMEM (scalar prefetch) -- valid output lengths.
    # x_ref:     (1, g, D, J) block with x_ref[0, gg, d, j] = padded[b, j*g+gg, d].
    # o_ref:     (1, D, F_pad) block, F_pad a multiple of 128 (lane dense).
    b = pl.program_id(0)
    _, g, d, j = x_ref.shape
    f_pad = o_ref.shape[-1]

    # ---- Stage 1: chunk sums over the g axis (pure VPU adds, f32 accum). ----
    cs = jnp.zeros((d, j), jnp.float32)
    if g <= 256:
        for gg in range(g):                       # static, fully unrolled
            cs = cs + x_ref[0, gg].astype(jnp.float32)
    else:
        def body(gg, acc):
            return acc + x_ref[0, gg].astype(jnp.float32)
        cs = jax.lax.fori_loop(0, g, body, cs)

    # ---- Stage 2: frame sums from chunk sums. ----
    if stride_c == 1:
        # hop divides win: frame f = sum of win_c consecutive chunk sums.
        if f_pad + win_c - 1 > j:
            pad_w = f_pad + win_c - 1 - j
            cs = jnp.concatenate(
                [cs, jnp.zeros((d, pad_w), jnp.float32)], axis=-1)
        fs = jnp.zeros((d, f_pad), jnp.float32)
        for r in range(win_c):                    # static lane-offset slices
            fs = fs + cs[:, r:r + f_pad]
    else:
        # General case (hop does not divide win): tiny 0/1 aggregation matrix
        # generated in VMEM with iotas, applied on the MXU (frames on lanes).
        # TODO(synk): for stride_c > 1 with very large nframe this (J, F_pad)
        # matrix is O(F^2); tile the frame axis if that config ever matters.
        j_ids = jax.lax.broadcasted_iota(jnp.int32, (j, f_pad), 0)
        f_ids = jax.lax.broadcasted_iota(jnp.int32, (j, f_pad), 1)
        start = f_ids * stride_c
        agg = jnp.where((j_ids >= start) & (j_ids < start + win_c), 1.0, 0.0)
        fs = jnp.dot(cs, agg, preferred_element_type=jnp.float32)

    # ---- Threshold (in f32) + fused olens length mask, lane-dense store. ----
    frame_ids = jax.lax.broadcasted_iota(jnp.int32, (d, f_pad), 1)
    valid = frame_ids < olens_ref[b]
    o_ref[0] = jnp.where((fs > thresh) & valid, 1.0, 0.0).astype(o_ref.dtype)


def label_aggregate(x, ilens=None, *, win_length=512, hop_length=128,
                    center=True):
    """JAX/Pallas equivalent of LabelAggregate.forward.

    Args:
      x:     (B, Nsamples, D) float array of label activations.
      ilens: optional (B,) int array of valid input lengths.
    Returns:
      (output, olens): output (B, Frames, D) in x.dtype; olens (B,) int or None.
    """
    bs, n_samples, label_dim = x.shape

    if center:
        pad = win_length // 2
        # Replicate-block padding exactly as the reference: the zero pad is
        # overwritten with copies of the first / last `pad` original frames.
        # (As in the reference, this requires n_samples >= pad.)
        padded = jnp.concatenate(
            [x[:, :pad, :], x, x[:, n_samples - pad:, :]], axis=1)
        t_pad = n_samples + 2 * pad
    else:
        # TODO(synk): the reference module leaves nframe undefined for
        # center=False; this is the natural no-padding generalisation.
        padded = x
        t_pad = n_samples

    nframe = (t_pad - win_length) // hop_length + 1

    # Factor window/hop through g = gcd(win, hop): every frame is the sum of
    # win_c = win//g consecutive g-chunks, starting every stride_c = hop//g
    # chunks -> only O(T) chunk sums needed, no dense framing matrix in HBM.
    g = math.gcd(win_length, hop_length)
    stride_c = hop_length // g
    win_c = win_length // g
    n_chunks = (nframe - 1) * stride_c + win_c
    t_used = n_chunks * g                                   # <= t_pad

    # Layout plumbing in XLA: (B, t_used, D) -> (B, g, D, n_chunks) so the
    # long chunk axis is the TPU lane axis inside the kernel.
    x_r = (padded[:, :t_used, :]
           .reshape(bs, n_chunks, g, label_dim)
           .transpose(0, 2, 3, 1))

    # Pad the frame axis to a multiple of 128 for lane-dense output stores.
    f_pad = ((nframe + 127) // 128) * 128

    if ilens is not None:
        eff_ilens = (ilens + 2 * (win_length // 2)) if center else ilens
        olens = (eff_ilens - win_length) // hop_length + 1
        olens_arg = olens.astype(jnp.int32)
    else:
        olens = None
        olens_arg = jnp.full((bs,), nframe, dtype=jnp.int32)

    kernel = functools.partial(
        _label_agg_kernel,
        stride_c=stride_c, win_c=win_c, thresh=float(win_length // 2))

    out_t = pl.pallas_call(
        kernel,
        out_shape=jax.ShapeDtypeStruct((bs, label_dim, f_pad), x.dtype),
        grid_spec=pltpu.PrefetchScalarGridSpec(
            num_scalar_prefetch=1,
            grid=(bs,),
            in_specs=[
                pl.BlockSpec((1, g, label_dim, n_chunks),
                             lambda b, olens_smem: (b, 0, 0, 0)),
            ],
            out_specs=pl.BlockSpec((1, label_dim, f_pad),
                                   lambda b, olens_smem: (b, 0, 0)),
        ),
        compiler_params=pltpu.CompilerParams(
            dimension_semantics=("parallel",),
            vmem_limit_bytes=32 * 1024 * 1024,
        ),
    )(olens_arg, x_r)

    # Drop the frame padding and restore (B, Frames, D).
    out = out_t[:, :, :nframe].transpose(0, 2, 1)
    return out, olens


def _reference(x, ilens, win, hop):
    """Pure-JAX reference with the same semantics as the PyTorch forward."""
    b, n, d = x.shape
    pad = win // 2
    padded = jnp.concatenate([x[:, :pad, :], x, x[:, n - pad:, :]], axis=1)
    t_pad = n + 2 * pad
    nframe = (t_pad - win) // hop + 1
    frames = jnp.stack(
        [padded[:, f * hop:f * hop + win, :].sum(axis=1) for f in range(nframe)],
        axis=1)
    out = (frames > (win // 2)).astype(x.dtype)
    if ilens is None:
        return out, None
    olens = (ilens + 2 * pad - win) // hop + 1
    mask = jnp.arange(nframe)[None, :, None] < olens[:, None, None]
    return jnp.where(mask, out, jnp.zeros((), x.dtype)), olens


if __name__ == "__main__":
    key = jax.random.PRNGKey(0)
    B, N, D = 2, 64, 8

    # Binary-ish labels in {0, 1} as the module expects label activations.
    x = (jax.random.uniform(key, (B, N, D)) > 0.5).astype(jnp.float32)
    ilens = jnp.array([N, N - 12], dtype=jnp.int32)

    # 1) hop divides win (module-default style) -> shift-and-add path.
    out, olens = label_aggregate(x, ilens, win_length=16, hop_length=4)
    out = jax.block_until_ready(out)
    ref, olens_r = _reference(x, ilens, 16, 4)
    assert out.shape == ref.shape and out.dtype == x.dtype
    assert jnp.array_equal(out, ref), "mismatch vs reference (win=16, hop=4)"
    assert jnp.array_equal(olens, olens_r)

    # 2) No ilens -> no length masking, olens is None.
    out2, olens2 = label_aggregate(x, None, win_length=16, hop_length=4)
    out2 = jax.block_until_ready(out2)
    ref2, _ = _reference(x, None, 16, 4)
    assert olens2 is None
    assert jnp.array_equal(out2, ref2), "mismatch vs reference (no ilens)"

    # 3) hop does not divide win -> generated aggregation-matrix (MXU) path.
    out3, olens3 = label_aggregate(x, ilens, win_length=16, hop_length=6)
    out3 = jax.block_until_ready(out3)
    ref3, olens_r3 = _reference(x, ilens, 16, 6)
    assert jnp.array_equal(out3, ref3), "mismatch vs reference (win=16, hop=6)"
    assert jnp.array_equal(olens3, olens_r3)

    # 4) bf16 labels go straight through (no wrapper-side f32 cast).
    xb = x.astype(jnp.bfloat16)
    out4, _ = label_aggregate(xb, ilens, win_length=16, hop_length=4)
    out4 = jax.block_until_ready(out4)
    ref4, _ = _reference(xb, ilens, 16, 4)
    assert out4.dtype == jnp.bfloat16
    assert jnp.array_equal(out4, ref4), "mismatch vs reference (bf16)"

    print("KERNEL_OK")
</pallas_src>

<mosaic_0001>
module attributes {stable_mosaic.version = 11 : i64} {
  func.func @_label_agg_kernel(%arg0: i32, %arg1: memref<2xi32, #tpu.memory_space<smem>>, %arg2: memref<1x4x8x20xf32, #tpu.memory_space<vmem>>, %arg3: memref<1x8x128xf32, #tpu.memory_space<vmem>>) attributes {dimension_semantics = [#tpu.dimension_semantics<parallel>], iteration_bounds = array<i64: 2>, scalar_prefetch = 1 : i64, scratch_operands = 0 : i64, tpu.core_type = #tpu.core_type<tc>, window_params = [{transform_indices = @transform_0, window_bounds = array<i64: 1, 4, 8, 20>}, {transform_indices = @transform_1, window_bounds = array<i64: 1, 8, 128>}]} {
    %cst = arith.constant 0.000000e+00 : f32
    %0 = vector.broadcast %cst : f32 to vector<8x20xf32>
    %c0 = arith.constant 0 : index
    %c0_0 = arith.constant 0 : index
    %c0_1 = arith.constant 0 : index
    %c0_2 = arith.constant 0 : index
    %1 = vector.load %arg2[%c0, %c0_0, %c0_1, %c0_2] : memref<1x4x8x20xf32, #tpu.memory_space<vmem>>, vector<1x1x8x20xf32>
    %2 = vector.shape_cast %1 : vector<1x1x8x20xf32> to vector<8x20xf32>
    %3 = arith.addf %0, %2 : vector<8x20xf32>
    %c0_3 = arith.constant 0 : index
    %c1 = arith.constant 1 : index
    %c0_4 = arith.constant 0 : index
    %c0_5 = arith.constant 0 : index
    %4 = vector.load %arg2[%c0_3, %c1, %c0_4, %c0_5] : memref<1x4x8x20xf32, #tpu.memory_space<vmem>>, vector<1x1x8x20xf32>
    %5 = vector.shape_cast %4 : vector<1x1x8x20xf32> to vector<8x20xf32>
    %6 = arith.addf %3, %5 : vector<8x20xf32>
    %c0_6 = arith.constant 0 : index
    %c2 = arith.constant 2 : index
    %c0_7 = arith.constant 0 : index
    %c0_8 = arith.constant 0 : index
    %7 = vector.load %arg2[%c0_6, %c2, %c0_7, %c0_8] : memref<1x4x8x20xf32, #tpu.memory_space<vmem>>, vector<1x1x8x20xf32>
    %8 = vector.shape_cast %7 : vector<1x1x8x20xf32> to vector<8x20xf32>
    %9 = arith.addf %6, %8 : vector<8x20xf32>
    %c0_9 = arith.constant 0 : index
    %c3 = arith.constant 3 : index
    %c0_10 = arith.constant 0 : index
    %c0_11 = arith.constant 0 : index
    %10 = vector.load %arg2[%c0_9, %c3, %c0_10, %c0_11] : memref<1x4x8x20xf32, #tpu.memory_space<vmem>>, vector<1x1x8x20xf32>
    %11 = vector.shape_cast %10 : vector<1x1x8x20xf32> to vector<8x20xf32>
    %12 = arith.addf %9, %11 : vector<8x20xf32>
    %cst_12 = arith.constant 0.000000e+00 : f32
    %13 = vector.broadcast %cst_12 : f32 to vector<8x111xf32>
    %14 = tpu.concatenate %12, %13 in 1 : vector<8x20xf32>, vector<8x111xf32> -> vector<8x131xf32>
    %cst_13 = arith.constant 0.000000e+00 : f32
    %15 = vector.broadcast %cst_13 : f32 to vector<8x128xf32>
    %16 = vector.extract_strided_slice %14 {offsets = [0, 0], sizes = [8, 128], strides = [1, 1]} : vector<8x131xf32> to vector<8x128xf32>
    %17 = arith.addf %15, %16 : vector<8x128xf32>
    %18 = vector.extract_strided_slice %14 {offsets = [0, 1], sizes = [8, 128], strides = [1, 1]} : vector<8x131xf32> to vector<8x128xf32>
    %19 = arith.addf %17, %18 : vector<8x128xf32>
    %20 = vector.extract_strided_slice %14 {offsets = [0, 2], sizes = [8, 128], strides = [1, 1]} : vector<8x131xf32> to vector<8x128xf32>
    %21 = arith.addf %19, %20 : vector<8x128xf32>
    %22 = vector.extract_strided_slice %14 {offsets = [0, 3], sizes = [8, 128], strides = [1, 1]} : vector<8x131xf32> to vector<8x128xf32>
    %23 = arith.addf %21, %22 : vector<8x128xf32>
    %24 = tpu.iota {dimensions = array<i32: 1>} : vector<8x128xi32>
    %25 = arith.index_cast %arg0 : i32 to index
    %26 = memref.load %arg1[%25] : memref<2xi32, #tpu.memory_space<smem>>
    %27 = vector.broadcast %26 : i32 to vector<8x128xi32>
    %28 = arith.cmpi slt, %24, %27 : vector<8x128xi32>
    %cst_14 = arith.constant 8.000000e+00 : f32
    %29 = vector.broadcast %cst_14 : f32 to vector<8x128xf32>
    %30 = arith.cmpf ogt, %23, %29 : vector<8x128xf32>
    %31 = arith.andi %30, %28 : vector<8x128xi1>
    %cst_15 = arith.constant 1.000000e+00 : f32
    %cst_16 = arith.constant 0.000000e+00 : f32
    %32 = vector.broadcast %cst_15 : f32 to vector<8x128xf32>
    %33 = vector.broadcast %cst_16 : f32 to vector<8x128xf32>
    %34 = arith.select %31, %32, %33 : vector<8x128xi1>, vector<8x128xf32>
    %c0_17 = arith.constant 0 : index
    %c0_18 = arith.constant 0 : index
    %c0_19 = arith.constant 0 : index
    %35 = vector.load %arg3[%c0_17, %c0_18, %c0_19] : memref<1x8x128xf32, #tpu.memory_space<vmem>>, vector<1x8x128xf32>
    %36 = vector.shape_cast %35 : vector<1x8x128xf32> to vector<8x128xf32>
    %37 = vector.shape_cast %34 : vector<8x128xf32> to vector<1x8x128xf32>
    tpu.vector_store %arg3[%c0_17, %c0_18, %c0_19], %37 {strides = array<i32>} : memref<1x8x128xf32, #tpu.memory_space<vmem>>, vector<1x8x128xf32>,
    return
  }
  func.func @transform_0(%arg0: i32, %arg1: memref<2xi32, #tpu.memory_space<smem>>) -> (i32, i32, i32, i32) {
    %c0_i32 = arith.constant 0 : i32
    %c0_i32_0 = arith.constant 0 : i32
    %c0_i32_1 = arith.constant 0 : i32
    %c0_i32_2 = arith.constant 0 : i32
    return %arg0, %c0_i32, %c0_i32_0, %c0_i32_1 : i32, i32, i32, i32
  }
  func.func @transform_1(%arg0: i32, %arg1: memref<2xi32, #tpu.memory_space<smem>>) -> (i32, i32, i32) {
    %c0_i32 = arith.constant 0 : i32
    %c0_i32_0 = arith.constant 0 : i32
    %c0_i32_1 = arith.constant 0 : i32
    return %arg0, %c0_i32, %c0_i32_0 : i32, i32, i32
  }
}

</mosaic_0001>

<llo_original>
// kernel: tpu_custom_call.1
$region0: #{tpu_custom_call.1}
  #allocation0 [shape = 'u32[]', space=smem, size = 0x4, offset = 0x4, fixed_abs, tag = 'smem constant byte address 0x4 - core index']
  #allocation1 [shape = 'u32[144,128]{1,0:T(1,128)}', space=vmem, size = 0x12000, scoped, tag = 'internal scratch']
  #allocation2 [shape = 's32[1]{0}', space=sflag, size = 0x4, scoped, tag = 'scoped memory for tpu_custom_call.1']
  #allocation3 [shape = 'u8[512]{0}', space=smem, size = 0x200, scoped, tag = 'prefetched SMEM operand 0']
  %s0 = inlined_call_operand.hbm [shape: s32[2], index: 0, kind: input, shape index: {}]
  %s1 = inlined_call_operand.hbm [shape: f32[2,4,8,20], index: 1, kind: input, shape index: {}]
  %s2 = inlined_call_operand.hbm [shape: f32[2,8,128], index: 2, kind: output, shape index: {}]
  %s3 = sld [smem:[#allocation0]]
  $region41: #{tpu_custom_call.1} parent=0
    _
  %s5 = ssub.s32 1, %s3
  %s6 = scalar_select 0, %s5, %s3
  %8 = dma.hbm_to_smem %s0, 16, [#allocation3], [#allocation2]
  %9 = dma.done [#allocation2], 16
  %10 = sfence
  $region1: #{tpu_custom_call.1} parent=0
    #allocation4 [shape = 'u8[32768]{0}', space=vmem, size = 0x8000, scoped, tag = 'input window, operand 1']
    #allocation5 [shape = 's32[2]{0}', space=sflag, size = 0x8, scoped, tag = 'scoped memory for tpu_custom_call.1']
    #allocation6 [shape = 's32[2]{0}', space=sflag, size = 0x8, scoped, tag = 'scoped memory for tpu_custom_call.1']
    #allocation7 [shape = 'u8[8192]{0}', space=vmem, size = 0x2000, scoped, tag = 'output window, operand 0']
    %11 = vsyncpa [#allocation5], 0
    %s12 = scalar_lea.sflag [#allocation5], 1
    %13 = vsyncpa %s12, 0
    %14 = vsyncpa [#allocation6], 0
    %s15 = scalar_lea.sflag [#allocation6], 1
    %16 = vsyncpa %s15, 0
    loop: start=0, step=1, limit=4
    $region2: #{tpu_custom_call.1} parent=1 // loop_pre_header
      _
    $region3: #{tpu_custom_call.1} parent=1 // loop_header
      %s18 = sphi 0, %s22
      %p19 = scmp.ge.s32.totalorder %s18, 4
      %s28 = sphi 0, %s30
      %s31 = sphi 0, %s28
      %s32 = sphi 0, %s31
      %s48 = sphi 0, %s32
      %s54 = sphi 0, %s56
      %s57 = sphi 0, %s54
      %s58 = sphi 0, %s57
      %s74 = sphi 0, %s58
    $region4: #{tpu_custom_call.1} parent=1 // loop_header_branch
      %21 = sbr.rel (%p19) target = $region8
    $region5: #{tpu_custom_call.1} parent=1 // loop_body
      %s23 = ssub.s32 %s18, 1
      %s24 = ssub.s32 %s18, 2
      %s25 = sadd.s32 %s18, 1
      %s26 = ssub.s32 %s18, %s25
      %p27 = scmp.eq.s32.totalorder %s26, 0
      %s29 = sadd.s32 %s28, 1
      %s30 = scalar_select %p27, %s28, %s29
      %p33 = pneg %p27
      %p34 = scmp.eq.s32.totalorder %s18, 1
      %p35 = por %p33, %p34
      %p36 = scmp.ne.s32.totalorder %s28, %s31
      %p37 = scmp.eq.s32.totalorder %s18, 0
      %p38 = por %p36, %p37
      %p39 = scmp.ne.s32.totalorder %s28, %s31
      %p40 = scmp.eq.s32.totalorder %s23, 1
      %p41 = por %p39, %p40
      %p42 = scmp.ne.s32.totalorder %s31, %s32
      %p43 = scmp.eq.s32.totalorder %s23, 0
      %p44 = por %p42, %p43
      %p45 = scmp.ne.s32.totalorder %s31, %s32
      %p46 = scmp.eq.s32.totalorder %s24, 1
      %p47 = por %p45, %p46
      %p49 = scmp.ne.s32.totalorder %s32, %s48
      %p50 = scmp.eq.s32.totalorder %s24, 0
      %p51 = por %p49, %p50
      %s52 = ssub.s32 %s18, %s25
      %p53 = scmp.eq.s32.totalorder %s52, 0
      %s55 = sadd.s32 %s54, 1
      %s56 = scalar_select %p53, %s54, %s55
      %p59 = pneg %p53
      %p60 = scmp.eq.s32.totalorder %s18, 1
      %p61 = por %p59, %p60
      %p62 = scmp.ne.s32.totalorder %s54, %s57
      %p63 = scmp.eq.s32.totalorder %s18, 0
      %p64 = por %p62, %p63
      %p65 = scmp.ne.s32.totalorder %s54, %s57
      %p66 = scmp.eq.s32.totalorder %s23, 1
      %p67 = por %p65, %p66
      %p68 = scmp.ne.s32.totalorder %s57, %s58
      %p69 = scmp.eq.s32.totalorder %s23, 0
      %p70 = por %p68, %p69
      %p71 = scmp.ne.s32.totalorder %s57, %s58
      %p72 = scmp.eq.s32.totalorder %s24, 1
      %p73 = por %p71, %p72
      %p75 = scmp.ne.s32.totalorder %s58, %s74
      %p76 = scmp.eq.s32.totalorder %s24, 0
      %p77 = por %p75, %p76
      %p78 = scmp.le.s32.totalorder 1, %s18
      %p79 = scmp.lt.s32.totalorder %s18, 3
      %p80 = pnand %p78, %p79
      %p81 = pneg %p80
      // Predicated region
      $region9: #{tpu_custom_call.1} parent=5 // pred_check
        _
      $region10: #{tpu_custom_call.1} parent=5 // pred_check_branch
        %83 = sbr.rel (%p80) target = $region12
      $region11: #{tpu_custom_call.1} parent=5 // pred_region
        %s84 = ssub.s32 %s18, 1
      $region12: #{tpu_custom_call.1} parent=5 // pred_fallthru
        _
      %p85 = scmp.lt.s32.totalorder %s18, 2
      // Predicated region
      $region13: #{tpu_custom_call.1} parent=5 // pred_check
        %p86 = pneg %p85
      $region14: #{tpu_custom_call.1} parent=5 // pred_check_branch
        %88 = sbr.rel (%p86) target = $region16
      $region15: #{tpu_custom_call.1} parent=5 // pred_region
        // Predicated region
        $region17: #{tpu_custom_call.1} parent=15 // pred_check
          %p89 = pneg %p38
        $region18: #{tpu_custom_call.1} parent=15 // pred_check_branch
          %91 = sbr.rel (%p89) target = $region20
        $region19: #{tpu_custom_call.1} parent=15 // pred_region
          %s92 = sand.u32 %s28, 1
          %s93 = scalar_lea.sflag [#allocation5], %s92
          %s94 = sand.u32 %s28, 1
          %s95 = smul.addr %s94, 32
          %s96 = scalar_lea.vmem [#allocation4], %s95
          %s98 = ssub.s32 512, 512
          %99 = vsyncadd %s93, %s98
          %s100 = smul.addr %s18, 4
          %s101 = smul.addr %s100, 128
          %s102 = scalar_lea.hbm %s1, %s101
          %s103 = sshll.u32 %s96, 4
          %s104 = int_to_ptr.vmem [resolvable:$true] %s103
          %109 = dma.hbm_to_vmem [thread:$0]  %s102, 512, %s104, %s93, 128, 128, 8
        $region20: #{tpu_custom_call.1} parent=15 // pred_fallthru
          _
      $region16: #{tpu_custom_call.1} parent=5 // pred_fallthru
        _
      %p110 = scmp.le.s32.totalorder 1, %s18
      %p111 = scmp.lt.s32.totalorder %s18, 3
      %p112 = pnand %p110, %p111
      %p113 = pneg %p112
      // Predicated region
      $region21: #{tpu_custom_call.1} parent=5 // pred_check
        _
      $region22: #{tpu_custom_call.1} parent=5 // pred_check_branch
        %115 = sbr.rel (%p112) target = $region24
      $region23: #{tpu_custom_call.1} parent=5 // pred_region
        %s116 = ssub.s32 %s18, 1
        %s117 = sand.u32 %s31, 1
        %s118 = scalar_lea.sflag [#allocation5], %s117
        %s119 = sand.u32 %s31, 1
        %s120 = smul.addr %s119, 32
        %s121 = scalar_lea.vmem [#allocation4], %s120
        // Predicated region
        $region25: #{tpu_custom_call.1} parent=23 // pred_check
          %p122 = pneg %p44
        $region26: #{tpu_custom_call.1} parent=23 // pred_check_branch
          %124 = sbr.rel (%p122) target = $region28
        $region27: #{tpu_custom_call.1} parent=23 // pred_region
          %125 = dma.done %s118, 512
        $region28: #{tpu_custom_call.1} parent=23 // pred_fallthru
          _
        %s126 = sand.u32 %s31, 1
        %s127 = scalar_lea.sflag [#allocation5], %s126
        %s128 = sand.u32 %s31, 1
        %s129 = smul.addr %s128, 32
        %s130 = scalar_lea.vmem [#allocation4], %s129
        %p131 = pneg %p44
        %p132 = pneg %p41
        %p133 = pneg %p70
        %p134 = pneg %p67
        %s135 = sand.u32 %s57, 1
        %s136 = scalar_lea.sflag [#allocation6], %s135
        %s137 = sand.u32 %s57, 1
        %s138 = smul.addr %s137, 8
        %s139 = scalar_lea.vmem [#allocation7], %s138
        %v140 = vld [vmem:[%s121] sm:$0xff]
        %v141 = vadd.f32 %v140, 0.0
        %s142 = scalar_lea.vmem %s121, 8 [#allocation4]
        %v143 = vld [vmem:[%s142] sm:$0xff]
        %v144 = vadd.f32 %v141, %v143
        %s145 = scalar_lea.vmem %s121, 16 [#allocation4]
        %v146 = vld [vmem:[%s145] sm:$0xff]
        %v147 = vadd.f32 %v144, %v146
        %s148 = scalar_lea.vmem %s121, 24 [#allocation4]
        %v149 = vld [vmem:[%s148] sm:$0xff]
        %v150 = vadd.f32 %v147, %v149
        %vm151 = vcmask 162816
        %v152 = vsel %vm151, %v150, 0.0
        %v153 = vadd.f32 %v152, 0.0
        %156 = vrot.lane.b32.xlu0 %v152, 127
        %v157 = vpop.permute.xlu0 %156
        %158 = vrot.lane.b32.xlu0 0.0, 127
        %v159 = vpop.permute.xlu0 %158
        %vm160 = vcmask 1039360
        %v161 = vsel %vm160, %v157, %v159
        %v163 = vadd.f32 %v153, %v161
        %164 = vrot.lane.b32.xlu0 %v152, 126
        %v165 = vpop.permute.xlu0 %164
        %166 = vrot.lane.b32.xlu0 0.0, 126
        %v167 = vpop.permute.xlu0 %166
        %vm168 = vcmask 1031168
        %v169 = vsel %vm168, %v165, %v167
        %v171 = vadd.f32 %v163, %v169
        %172 = vrot.lane.b32.xlu0 %v152, 125
        %v173 = vpop.permute.xlu0 %172
        %174 = vrot.lane.b32.xlu0 0.0, 125
        %v175 = vpop.permute.xlu0 %174
        %vm176 = vcmask 1022976
        %v177 = vsel %vm176, %v173, %v175
        %v179 = vadd.f32 %v171, %v177
        %v180 = vlaneseq
        %v181 = vand.u32 %v180, 127
        %s182 = sld [smem:[#allocation3 + %s23]]
        %v183 = vstv %s182
        %vm184 = vcmp.lt.s32.totalorder %v181, %v183
        %vm185 = vcmp.gt.f32.partialorder %v179, 8.0
        %vm186 = vmand %vm185, %vm184
        %v187 = vsel %vm186, 1.0, 0.0
        %188 = vst [vmem:[%s139] sm:$0xff] %v187
        %s189 = sand.u32 %s57, 1
        %s190 = scalar_lea.sflag [#allocation6], %s189
        %s191 = sand.u32 %s57, 1
        %s192 = smul.addr %s191, 8
        %s193 = scalar_lea.vmem [#allocation7], %s192
        // Predicated region
        $region29: #{tpu_custom_call.1} parent=23 // pred_check
          %p194 = pneg %p67
        $region30: #{tpu_custom_call.1} parent=23 // pred_check_branch
          %196 = sbr.rel (%p194) target = $region32
        $region31: #{tpu_custom_call.1} parent=23 // pred_region
          %s198 = ssub.s32 128, 128
          %199 = vsyncadd %s190, %s198
          %s200 = smul.addr %s23, 128
          %s201 = scalar_lea.hbm %s2, %s200
          %s203 = sshll.u32 %s193, 4
          %s204 = int_to_ptr.vmem [resolvable:$true] %s203
          %206 = dma.vmem_to_hbm [thread:$0]  %s204, 128, %s201, %s190
        $region32: #{tpu_custom_call.1} parent=23 // pred_fallthru
          _
      $region24: #{tpu_custom_call.1} parent=5 // pred_fallthru
        _
      %p207 = scmp.le.s32.totalorder 2, %s18
      // Predicated region
      $region33: #{tpu_custom_call.1} parent=5 // pred_check
        %p208 = pneg %p207
      $region34: #{tpu_custom_call.1} parent=5 // pred_check_branch
        %210 = sbr.rel (%p208) target = $region36
      $region35: #{tpu_custom_call.1} parent=5 // pred_region
        %s211 = ssub.s32 %s18, 2
        // Predicated region
        $region37: #{tpu_custom_call.1} parent=35 // pred_check
          %p212 = pneg %p73
        $region38: #{tpu_custom_call.1} parent=35 // pred_check_branch
          %214 = sbr.rel (%p212) target = $region40
        $region39: #{tpu_custom_call.1} parent=35 // pred_region
          %s215 = sand.u32 %s58, 1
          %s216 = scalar_lea.sflag [#allocation6], %s215
          %s217 = sand.u32 %s58, 1
          %s218 = smul.addr %s217, 8
          %s219 = scalar_lea.vmem [#allocation7], %s218
          %220 = dma.done %s216, 128
        $region40: #{tpu_custom_call.1} parent=35 // pred_fallthru
          _
      $region36: #{tpu_custom_call.1} parent=5 // pred_fallthru
        _
    $region6: #{tpu_custom_call.1} parent=1 // loop_footer
      %s22 = sadd.s32 1, %s18
    $region7: #{tpu_custom_call.1} parent=1 // loop_footer_branch
      %17 = sbr.rel target = $region3
    $region8: #{tpu_custom_call.1} parent=1 // loop_exit
      _
    %221 = vsyncpa [#allocation5], 1
    %s222 = scalar_lea.sflag [#allocation5], 1
    %223 = vsyncpa %s222, 1
    %224 = vsyncpa [#allocation6], 1
    %s225 = scalar_lea.sflag [#allocation6], 1
    %226 = vsyncpa %s225, 1

</llo_original>
